<compile_context>
chip_gen: v6e
topology: v6e:2x2x1
jax: 0.10.0
libtpu: 0.0.40
codegen_flags: <defaults>
</compile_context>

<pallas_src>
import jax
import jax.numpy as jnp
from jax.experimental import pallas as pl
from jax.experimental.pallas import tpu as pltpu

HIDDEN = 256          # fc0 output width
OUT_FEATURES = 254    # logical fc1 output width
OUT_PADDED = 256      # MXU/lane-aligned padded fc1 width (compute only)
_TB_CAP = 2048        # max batch tile (multiple of 256; ~9 MB VMEM @ K=284,
                      # fits v5e's 16 MiB default scoped VMEM double-buffered)


def _round_up(x, m):
    return (x + m - 1) // m * m


def _mlp_kernel(x_ref, w0_ref, b0_ref, w1_ref, b1_ref, o_ref):
    # Cast x f32 -> bf16 in-kernel (saves a full standalone HBM cast pass).
    x = x_ref[...].astype(jnp.bfloat16)
    # fc0 + ReLU: bf16 operands, f32 accumulation on the MXU.
    h = jnp.dot(x, w0_ref[...], preferred_element_type=jnp.float32)
    h = jnp.maximum(h + b0_ref[...], 0.0).astype(jnp.bfloat16)
    # fc1 computed 256-wide (MXU aligned), stored 254-wide (masked tail lanes
    # cost only a vst slot, hidden under the HBM-bound DMA).
    out = jnp.dot(h, w1_ref[...], preferred_element_type=jnp.float32)
    out = out + b1_ref[...]
    o_ref[...] = out[:, :OUT_FEATURES].astype(o_ref.dtype)


def prepare_params(params):
    """One-time parameter prep (NOT per call): transpose PyTorch [out, in] ->
    [in, out], cast weights to bf16, zero-pad fc1 to a 256-wide compute."""
    w0 = params["w0"].T.astype(jnp.bfloat16)                     # [K, 256]
    w1 = params["w1"].T.astype(jnp.bfloat16)                     # [256, 254]
    pad_n = OUT_PADDED - w1.shape[1]
    w1 = jnp.pad(w1, ((0, 0), (0, pad_n)))                       # [256, 256]
    b0 = params["b0"][None, :].astype(jnp.float32)               # [1, 256]
    b1 = jnp.pad(params["b1"], (0, pad_n))[None, :].astype(jnp.float32)
    return {"w0": w0, "b0": b0, "w1": w1, "b1": b1}


@jax.jit
def post_embedding_processor(x, prepared):
    """x: [B, in_sz] float32, prepared: output of prepare_params. -> [B, 254] f32."""
    B, K = x.shape
    w0, b0, w1, b1 = prepared["w0"], prepared["b0"], prepared["w1"], prepared["b1"]

    # Batch tile: multiple of 8 (sublane), ~B/2 so the parallel grid has >=2
    # steps (both v7x TensorCores get work) whenever B >= 16, capped so VMEM
    # double-buffering stays well under default scoped limits.
    tb = min(_TB_CAP, _round_up(pl.cdiv(B, 2), 8))
    grid = (pl.cdiv(B, tb),)                     # ragged last block handled by Pallas

    full = lambda a: pl.BlockSpec(a.shape, lambda i: (0,) * a.ndim)

    flops = 2 * B * (K * HIDDEN + HIDDEN * OUT_FEATURES)
    bytes_accessed = (x.size * 4 + w0.size * 2 + w1.size * 2
                      + b0.size * 4 + b1.size * 4 + B * OUT_FEATURES * 4)

    out = pl.pallas_call(
        _mlp_kernel,
        out_shape=jax.ShapeDtypeStruct((B, OUT_FEATURES), jnp.float32),
        grid=grid,
        in_specs=[
            pl.BlockSpec((tb, K), lambda i: (i, 0)),   # x: f32, tiled over batch
            full(w0), full(b0),                        # weights/biases VMEM-resident
            full(w1), full(b1),
        ],
        out_specs=pl.BlockSpec((tb, OUT_FEATURES), lambda i: (i, 0)),
        compiler_params=pltpu.CompilerParams(
            dimension_semantics=("parallel",)),        # megacore split on v7x
        cost_estimate=pl.CostEstimate(
            flops=flops, transcendentals=0, bytes_accessed=bytes_accessed),
    )(x, w0, b0, w1, b1)

    return out                                         # [B, 254] f32, no extra copies


def init_params(num_copies, key):
    """Deterministic synthetic parameters matching the PyTorch module shapes."""
    in_sz = 256 + num_copies * 7
    dims = [(256, in_sz), (254, 256)]   # fc0: in_sz->256, fc1: 256->254
    params = {}
    for i, (fan_out, fan_in) in enumerate(dims):
        key, kw, kb = jax.random.split(key, 3)
        bound = 1.0 / jnp.sqrt(fan_in)
        params[f"w{i}"] = jax.random.uniform(
            kw, (fan_out, fan_in), jnp.float32, -bound, bound)
        params[f"b{i}"] = jax.random.uniform(
            kb, (fan_out,), jnp.float32, -bound, bound)
    return params


def reference_forward_f32(x, params):
    h = jnp.maximum(x @ params["w0"].T + params["b0"], 0.0)
    return h @ params["w1"].T + params["b1"]


def reference_forward_mixed(x, prepared):
    """Mirrors the kernel's bf16-operand / f32-accumulation arithmetic."""
    xb = x.astype(jnp.bfloat16)
    h = jnp.dot(xb, prepared["w0"], preferred_element_type=jnp.float32)
    h = jnp.maximum(h + prepared["b0"], 0.0).astype(jnp.bfloat16)
    out = jnp.dot(h, prepared["w1"],
                  preferred_element_type=jnp.float32) + prepared["b1"]
    return out[:, :OUT_FEATURES]


if __name__ == "__main__":
    num_copies = 4                       # in_sz = 256 + 4*7 = 284
    in_sz = 256 + num_copies * 7
    key = jax.random.PRNGKey(0)
    key, kx = jax.random.split(key)
    params = init_params(num_copies, key)
    prepared = prepare_params(params)    # one-time: transpose + bf16 + pad

    for batch in (8, 33):                # 33 exercises the ragged-grid path
        kx, k = jax.random.split(kx)
        x = jax.random.normal(k, (batch, in_sz), jnp.float32)

        out = jax.block_until_ready(post_embedding_processor(x, prepared))
        assert out.shape == (batch, OUT_FEATURES), out.shape

        ref_mixed = reference_forward_mixed(x, prepared)
        assert jnp.allclose(out, ref_mixed, atol=1e-2, rtol=1e-2), \
            float(jnp.max(jnp.abs(out - ref_mixed)))

        ref_f32 = reference_forward_f32(x, params)   # bf16 weights loosen tolerance
        assert jnp.allclose(out, ref_f32, atol=5e-2, rtol=5e-2), \
            float(jnp.max(jnp.abs(out - ref_f32)))

    print("KERNEL_OK")
</pallas_src>

<mosaic_0001>
module attributes {stable_mosaic.version = 11 : i64} {
  func.func @_mlp_kernel(%arg0: i32, %arg1: memref<8x284xf32, #tpu.memory_space<vmem>>, %arg2: memref<284x256xbf16, #tpu.memory_space<vmem>>, %arg3: memref<1x256xf32, #tpu.memory_space<vmem>>, %arg4: memref<256x256xbf16, #tpu.memory_space<vmem>>, %arg5: memref<1x256xf32, #tpu.memory_space<vmem>>, %arg6: memref<8x254xf32, #tpu.memory_space<vmem>>) attributes {dimension_semantics = [#tpu.dimension_semantics<parallel>], iteration_bounds = array<i64: 1>, scalar_prefetch = 0 : i64, scratch_operands = 0 : i64, tpu.core_type = #tpu.core_type<tc>, window_params = [{transform_indices = @transform_0, window_bounds = array<i64: 8, 284>}, {pipeline_mode = #tpu.pipeline_mode<synchronous>, transform_indices = @transform_1, window_bounds = array<i64: 284, 256>}, {pipeline_mode = #tpu.pipeline_mode<synchronous>, transform_indices = @transform_2, window_bounds = array<i64: 1, 256>}, {pipeline_mode = #tpu.pipeline_mode<synchronous>, transform_indices = @transform_3, window_bounds = array<i64: 256, 256>}, {pipeline_mode = #tpu.pipeline_mode<synchronous>, transform_indices = @transform_4, window_bounds = array<i64: 1, 256>}, {transform_indices = @transform_5, window_bounds = array<i64: 8, 254>}]} {
    %c0 = arith.constant 0 : index
    %c0_0 = arith.constant 0 : index
    %0 = vector.load %arg1[%c0, %c0_0] : memref<8x284xf32, #tpu.memory_space<vmem>>, vector<8x284xf32>
    %1 = arith.truncf %0 : vector<8x284xf32> to vector<8x284xbf16>
    %c0_1 = arith.constant 0 : index
    %c0_2 = arith.constant 0 : index
    %2 = vector.load %arg2[%c0_1, %c0_2] : memref<284x256xbf16, #tpu.memory_space<vmem>>, vector<284x256xbf16>
    %cst = arith.constant dense<0.000000e+00> : vector<8x256xf32>
    %3 = tpu.matmul %1, %2, %cst {dimension_numbers = #tpu.dot_dimension_numbers<[1], [0], [0], [1], [0, 0, 1, 1], [], []>} : vector<8x284xbf16>, vector<284x256xbf16>, vector<8x256xf32> -> vector<8x256xf32>
    %c0_3 = arith.constant 0 : index
    %c0_4 = arith.constant 0 : index
    %4 = vector.load %arg3[%c0_3, %c0_4] : memref<1x256xf32, #tpu.memory_space<vmem>>, vector<1x256xf32>
    %5 = vector.broadcast %4 : vector<1x256xf32> to vector<8x256xf32>
    %6 = arith.addf %3, %5 : vector<8x256xf32>
    %cst_5 = arith.constant 0.000000e+00 : f32
    %7 = vector.broadcast %cst_5 : f32 to vector<8x256xf32>
    %8 = arith.maximumf %6, %7 : vector<8x256xf32>
    %9 = arith.truncf %8 : vector<8x256xf32> to vector<8x256xbf16>
    %c0_6 = arith.constant 0 : index
    %c0_7 = arith.constant 0 : index
    %10 = vector.load %arg4[%c0_6, %c0_7] : memref<256x256xbf16, #tpu.memory_space<vmem>>, vector<256x256xbf16>
    %cst_8 = arith.constant dense<0.000000e+00> : vector<8x256xf32>
    %11 = tpu.matmul %9, %10, %cst_8 {dimension_numbers = #tpu.dot_dimension_numbers<[1], [0], [0], [1], [0, 0, 1, 1], [], []>} : vector<8x256xbf16>, vector<256x256xbf16>, vector<8x256xf32> -> vector<8x256xf32>
    %c0_9 = arith.constant 0 : index
    %c0_10 = arith.constant 0 : index
    %12 = vector.load %arg5[%c0_9, %c0_10] : memref<1x256xf32, #tpu.memory_space<vmem>>, vector<1x256xf32>
    %13 = vector.broadcast %12 : vector<1x256xf32> to vector<8x256xf32>
    %14 = arith.addf %11, %13 : vector<8x256xf32>
    %15 = vector.extract_strided_slice %14 {offsets = [0, 0], sizes = [8, 254], strides = [1, 1]} : vector<8x256xf32> to vector<8x254xf32>
    %c0_11 = arith.constant 0 : index
    %c0_12 = arith.constant 0 : index
    %16 = vector.load %arg6[%c0_11, %c0_12] : memref<8x254xf32, #tpu.memory_space<vmem>>, vector<8x254xf32>
    tpu.vector_store %arg6[%c0_11, %c0_12], %15 {strides = array<i32>} : memref<8x254xf32, #tpu.memory_space<vmem>>, vector<8x254xf32>,
    return
  }
  func.func @transform_0(%arg0: i32) -> (i32, i32) {
    %c0_i32 = arith.constant 0 : i32
    %c0_i32_0 = arith.constant 0 : i32
    return %arg0, %c0_i32 : i32, i32
  }
  func.func @transform_1(%arg0: i32) -> (i32, i32) {
    %c0_i32 = arith.constant 0 : i32
    %c0_i32_0 = arith.constant 0 : i32
    %c0_i32_1 = arith.constant 0 : i32
    return %c0_i32, %c0_i32_0 : i32, i32
  }
  func.func @transform_2(%arg0: i32) -> (i32, i32) {
    %c0_i32 = arith.constant 0 : i32
    %c0_i32_0 = arith.constant 0 : i32
    %c0_i32_1 = arith.constant 0 : i32
    return %c0_i32, %c0_i32_0 : i32, i32
  }
  func.func @transform_3(%arg0: i32) -> (i32, i32) {
    %c0_i32 = arith.constant 0 : i32
    %c0_i32_0 = arith.constant 0 : i32
    %c0_i32_1 = arith.constant 0 : i32
    return %c0_i32, %c0_i32_0 : i32, i32
  }
  func.func @transform_4(%arg0: i32) -> (i32, i32) {
    %c0_i32 = arith.constant 0 : i32
    %c0_i32_0 = arith.constant 0 : i32
    %c0_i32_1 = arith.constant 0 : i32
    return %c0_i32, %c0_i32_0 : i32, i32
  }
  func.func @transform_5(%arg0: i32) -> (i32, i32) {
    %c0_i32 = arith.constant 0 : i32
    %c0_i32_0 = arith.constant 0 : i32
    return %arg0, %c0_i32 : i32, i32
  }
}

</mosaic_0001>

<llo_original>
// kernel: post_embedding_processor.1
$region0: #{post_embedding_processor.1}
  #allocation0 [shape = 'u32[]', space=smem, size = 0x4, offset = 0x4, fixed_abs, tag = 'smem constant byte address 0x4 - core index']
  #allocation1 [shape = 'u32[144,128]{1,0:T(1,128)}', space=vmem, size = 0x12000, scoped, tag = 'internal scratch']
  %s0 = inlined_call_operand.hbm [shape: f32[8,284], index: 0, kind: input, shape index: {}]
  %s1 = inlined_call_operand.hbm [shape: bf16[284,256], index: 1, kind: input, shape index: {}]
  %s2 = inlined_call_operand.hbm [shape: f32[1,256], index: 2, kind: input, shape index: {}]
  %s3 = inlined_call_operand.hbm [shape: bf16[256,256], index: 3, kind: input, shape index: {}]
  %s4 = inlined_call_operand.vmem [shape: f32[1,256], index: 4, kind: input, shape index: {}]
  %s5 = inlined_call_operand.hbm [shape: f32[8,254], index: 5, kind: output, shape index: {}]
  %s6 = sld [smem:[#allocation0]]
  $region46: #{post_embedding_processor.1} parent=0
    _
  %s8 = ssub.s32 1, %s6
  %s9 = scalar_select 0, %s8, %s6
  $region1: #{post_embedding_processor.1} parent=0
    #allocation2 [shape = 'u8[12288]{0}', space=vmem, size = 0x3000, scoped, tag = 'input window, operand 0, single buffered']
    #allocation3 [shape = 's32[1]{0}', space=sflag, size = 0x4, scoped, tag = 'scoped memory for post_embedding_processor.1']
    #allocation4 [shape = 's32[1]{0}', space=sflag, size = 0x4, scoped, tag = 'scoped memory for post_embedding_processor.1']
    #allocation5 [shape = 'u8[147456]{0}', space=vmem, size = 0x24000, scoped, tag = 'input window, operand 1, single buffered']
    #allocation6 [shape = 's32[1]{0}', space=sflag, size = 0x4, scoped, tag = 'scoped memory for post_embedding_processor.1']
    #allocation7 [shape = 'u8[1024]{0}', space=vmem, size = 0x400, scoped, tag = 'input window, operand 2, single buffered']
    #allocation8 [shape = 'u8[131072]{0}', space=vmem, size = 0x20000, scoped, tag = 'input window, operand 3, single buffered']
    #allocation9 [shape = 's32[1]{0}', space=sflag, size = 0x4, scoped, tag = 'scoped memory for post_embedding_processor.1']
    #allocation10 [shape = 'u8[8192]{0}', space=vmem, size = 0x2000, scoped, tag = 'output window, operand 0, single buffered']
    %10 = vsyncpa [#allocation3], 0
    %11 = vsyncpa [#allocation6], 0
    %12 = vsyncpa [#allocation9], 0
    %13 = vsyncpa [#allocation4], 0
    // Predicated region
    $region2: #{post_embedding_processor.1} parent=1 // pred_check
      _
    $region3: #{post_embedding_processor.1} parent=1 // pred_check_branch
      %15 = sbr.rel (0) target = $region5
    $region4: #{post_embedding_processor.1} parent=1 // pred_region
      %s17 = ssub.s32 384, 384
      %18 = vsyncadd [#allocation3], %s17
      %s20 = sshll.u32 [#allocation2], 4
      %s21 = int_to_ptr.vmem [resolvable:$true] %s20
      %23 = dma.hbm_to_vmem [thread:$0]  %s0, 384, %s21, [#allocation3]
    $region5: #{post_embedding_processor.1} parent=1 // pred_fallthru
      _
    // Predicated region
    $region6: #{post_embedding_processor.1} parent=1 // pred_check
      _
    $region7: #{post_embedding_processor.1} parent=1 // pred_check_branch
      %25 = sbr.rel (0) target = $region9
    $region8: #{post_embedding_processor.1} parent=1 // pred_region
      %s27 = ssub.s32 4608, 4608
      %28 = vsyncadd [#allocation6], %s27
      %s29 = sshll.u32 [#allocation5], 4
      %s30 = int_to_ptr.vmem [resolvable:$true] %s29
      %35 = dma.hbm_to_vmem [thread:$0]  %s1, 4608, %s30, [#allocation6], 128, 128, 8
    $region9: #{post_embedding_processor.1} parent=1 // pred_fallthru
      _
    // Predicated region
    $region10: #{post_embedding_processor.1} parent=1 // pred_check
      _
    $region11: #{post_embedding_processor.1} parent=1 // pred_check_branch
      %37 = sbr.rel (0) target = $region13
    $region12: #{post_embedding_processor.1} parent=1 // pred_region
      %s39 = ssub.s32 32, 32
      %40 = vsyncadd [#allocation6], %s39
      %s42 = sshll.u32 [#allocation7], 4
      %s43 = int_to_ptr.vmem [resolvable:$true] %s42
      %45 = dma.hbm_to_vmem [thread:$0]  %s2, 32, %s43, [#allocation6]
    $region13: #{post_embedding_processor.1} parent=1 // pred_fallthru
      _
    // Predicated region
    $region14: #{post_embedding_processor.1} parent=1 // pred_check
      _
    $region15: #{post_embedding_processor.1} parent=1 // pred_check_branch
      %47 = sbr.rel (0) target = $region17
    $region16: #{post_embedding_processor.1} parent=1 // pred_region
      %s49 = ssub.s32 4096, 4096
      %50 = vsyncadd [#allocation9], %s49
      %s51 = sshll.u32 [#allocation8], 4
      %s52 = int_to_ptr.vmem [resolvable:$true] %s51
      %57 = dma.hbm_to_vmem [thread:$0]  %s3, 4096, %s52, [#allocation9], 128, 128, 8
    $region17: #{post_embedding_processor.1} parent=1 // pred_fallthru
      _
    // Predicated region
    $region18: #{post_embedding_processor.1} parent=1 // pred_check
      _
    $region19: #{post_embedding_processor.1} parent=1 // pred_check_branch
      %59 = sbr.rel (0) target = $region21
    $region20: #{post_embedding_processor.1} parent=1 // pred_region
      _
    $region21: #{post_embedding_processor.1} parent=1 // pred_fallthru
      _
    // Predicated region
    $region22: #{post_embedding_processor.1} parent=1 // pred_check
      _
    $region23: #{post_embedding_processor.1} parent=1 // pred_check_branch
      %61 = sbr.rel (0) target = $region25
    $region24: #{post_embedding_processor.1} parent=1 // pred_region
      %62 = dma.done [#allocation3], 384
    $region25: #{post_embedding_processor.1} parent=1 // pred_fallthru
      _
    // Predicated region
    $region26: #{post_embedding_processor.1} parent=1 // pred_check
      _
    $region27: #{post_embedding_processor.1} parent=1 // pred_check_branch
      %64 = sbr.rel (0) target = $region29
    $region28: #{post_embedding_processor.1} parent=1 // pred_region
      %65 = dma.done [#allocation6], 4608
    $region29: #{post_embedding_processor.1} parent=1 // pred_fallthru
      _
    // Predicated region
    $region30: #{post_embedding_processor.1} parent=1 // pred_check
      _
    $region31: #{post_embedding_processor.1} parent=1 // pred_check_branch
      %67 = sbr.rel (0) target = $region33
    $region32: #{post_embedding_processor.1} parent=1 // pred_region
      %68 = dma.done [#allocation6], 32
    $region33: #{post_embedding_processor.1} parent=1 // pred_fallthru
      _
    // Predicated region
    $region34: #{post_embedding_processor.1} parent=1 // pred_check
      _
    $region35: #{post_embedding_processor.1} parent=1 // pred_check_branch
      %70 = sbr.rel (0) target = $region37
    $region36: #{post_embedding_processor.1} parent=1 // pred_region
      %71 = dma.done [#allocation9], 4096
    $region37: #{post_embedding_processor.1} parent=1 // pred_fallthru
      _
    %v73 = vld [vmem:[#allocation2] sm:$0xff]
    %v74 = vld [vmem:[#allocation2 + $0x8] sm:$0xff]
    %v75 = vld [vmem:[#allocation2 + $0x10] sm:$0xff]
    %v76 = vpack.c.bf16 %v73, %v73
    %v77 = vpack.c.bf16 %v74, %v74
    %v78 = vpack.c.bf16 %v75, %v75
    %v79 = vld [vmem:[#allocation5] sm:$0xff]
    %v80 = vld [vmem:[#allocation5 + $0x8] sm:$0xff]
    %v81 = vld [vmem:[#allocation5 + $0x10] sm:$0xff]
    %v82 = vld [vmem:[#allocation5 + $0x18] sm:$0xff]
    %v83 = vld [vmem:[#allocation5 + $0x20] sm:$0xff]
    %v84 = vld [vmem:[#allocation5 + $0x28] sm:$0xff]
    %v85 = vld [vmem:[#allocation5 + $0x30] sm:$0xff]
    %v86 = vld [vmem:[#allocation5 + $0x38] sm:$0xff]
    %v87 = vld [vmem:[#allocation5 + $0x40] sm:$0xff]
    %v88 = vld [vmem:[#allocation5 + $0x48] sm:$0xff]
    %v89 = vld [vmem:[#allocation5 + $0x50] sm:$0xff]
    %v90 = vld [vmem:[#allocation5 + $0x58] sm:$0xff]
    %v91 = vld [vmem:[#allocation5 + $0x60] sm:$0xff]
    %v92 = vld [vmem:[#allocation5 + $0x68] sm:$0xff]
    %v93 = vld [vmem:[#allocation5 + $0x70] sm:$0xff]
    %v94 = vld [vmem:[#allocation5 + $0x78] sm:$0xff]
    %v95 = vld [vmem:[#allocation5 + $0x80] sm:$0xff]
    %v96 = vld [vmem:[#allocation5 + $0x88] sm:$0xff]
    %v97 = vld [vmem:[#allocation5 + $0x90] sm:$0xff]
    %v98 = vld [vmem:[#allocation5 + $0x98] sm:$0xff]
    %v99 = vld [vmem:[#allocation5 + $0xa0] sm:$0xff]
    %v100 = vld [vmem:[#allocation5 + $0xa8] sm:$0xff]
    %v101 = vld [vmem:[#allocation5 + $0xb0] sm:$0xff]
    %v102 = vld [vmem:[#allocation5 + $0xb8] sm:$0xff]
    %v103 = vld [vmem:[#allocation5 + $0xc0] sm:$0xff]
    %v104 = vld [vmem:[#allocation5 + $0xc8] sm:$0xff]
    %v105 = vld [vmem:[#allocation5 + $0xd0] sm:$0xff]
    %v106 = vld [vmem:[#allocation5 + $0xd8] sm:$0xff]
    %v107 = vld [vmem:[#allocation5 + $0xe0] sm:$0xff]
    %v108 = vld [vmem:[#allocation5 + $0xe8] sm:$0xff]
    %v109 = vld [vmem:[#allocation5 + $0xf0] sm:$0xff]
    %v110 = vld [vmem:[#allocation5 + $0xf8] sm:$0xff]
    %v111 = vld [vmem:[#allocation5 + $0x100] sm:$0xff]
    %v112 = vld [vmem:[#allocation5 + $0x108] sm:$0xff]
    %v113 = vld [vmem:[#allocation5 + $0x110] sm:$0xff]
    %v114 = vld [vmem:[#allocation5 + $0x118] sm:$0x33]
    %v115 = vld [vmem:[#allocation7] sm:$0x3]
    %v117 = vlaneseq
    %v118 = vshrl.u32 %v117, 7
    %v119 = vsub.s32 0, %v118
    %v120 = vrot.slane %v115, %v119
    %v121 = vlaneseq
    %v122 = vshrl.u32 %v121, 7
    %v123 = vsub.s32 1, %v122
    %v124 = vrot.slane %v115, %v123
    %v163 = vunpack.c.l.b16 %v79
    %v164 = vunpack.c.h.b16 %v79
    %v165 = vunpack.c.l.b16 %v80
    %v166 = vunpack.c.h.b16 %v80
    %v167 = vunpack.c.l.b16 %v81
    %v168 = vunpack.c.h.b16 %v81
    %v169 = vunpack.c.l.b16 %v82
    %v170 = vunpack.c.h.b16 %v82
    %v171 = vunpack.c.l.b16 %v83
    %v172 = vunpack.c.h.b16 %v83
    %v173 = vunpack.c.l.b16 %v84
    %v174 = vunpack.c.h.b16 %v84
    %v175 = vunpack.c.l.b16 %v85
    %v176 = vunpack.c.h.b16 %v85
    %v177 = vunpack.c.l.b16 %v86
    %v178 = vunpack.c.h.b16 %v86
    %v179 = vunpack.c.l.b16 %v87
    %v180 = vunpack.c.h.b16 %v87
    %v181 = vunpack.c.l.b16 %v88
    %v182 = vunpack.c.h.b16 %v88
    %v183 = vunpack.c.l.b16 %v89
    %v184 = vunpack.c.h.b16 %v89
    %v185 = vunpack.c.l.b16 %v90
    %v186 = vunpack.c.h.b16 %v90
    %v187 = vunpack.c.l.b16 %v91
    %v188 = vunpack.c.h.b16 %v91
    %v189 = vunpack.c.l.b16 %v92
    %v190 = vunpack.c.h.b16 %v92
    %v191 = vunpack.c.l.b16 %v93
    %v192 = vunpack.c.h.b16 %v93
    %v193 = vunpack.c.l.b16 %v94
    %v194 = vunpack.c.h.b16 %v94
    %v195 = vunpack.c.l.b16 %v95
    %v196 = vunpack.c.h.b16 %v95
    %v197 = vunpack.c.l.b16 %v96
    %v198 = vunpack.c.h.b16 %v96
    %v199 = vunpack.c.l.b16 %v97
    %v200 = vunpack.c.h.b16 %v97
    %v201 = vunpack.c.l.b16 %v98
    %v202 = vunpack.c.h.b16 %v98
    %v203 = vunpack.c.l.b16 %v99
    %v204 = vunpack.c.h.b16 %v99
    %v205 = vunpack.c.l.b16 %v100
    %v206 = vunpack.c.h.b16 %v100
    %v207 = vunpack.c.l.b16 %v101
    %v208 = vunpack.c.h.b16 %v101
    %v209 = vunpack.c.l.b16 %v102
    %v210 = vunpack.c.h.b16 %v102
    %v211 = vunpack.c.l.b16 %v103
    %v212 = vunpack.c.h.b16 %v103
    %v213 = vunpack.c.l.b16 %v104
    %v214 = vunpack.c.h.b16 %v104
    %v215 = vunpack.c.l.b16 %v105
    %v216 = vunpack.c.h.b16 %v105
    %v217 = vunpack.c.l.b16 %v106
    %v218 = vunpack.c.h.b16 %v106
    %v219 = vunpack.c.l.b16 %v107
    %v220 = vunpack.c.h.b16 %v107
    %v221 = vunpack.c.l.b16 %v108
    %v222 = vunpack.c.h.b16 %v108
    %v223 = vunpack.c.l.b16 %v109
    %v224 = vunpack.c.h.b16 %v109
    %v225 = vunpack.c.l.b16 %v110
    %v226 = vunpack.c.h.b16 %v110
    %v227 = vunpack.c.l.b16 %v111
    %v228 = vunpack.c.h.b16 %v111
    %v229 = vunpack.c.l.b16 %v112
    %v230 = vunpack.c.h.b16 %v112
    %v231 = vunpack.c.l.b16 %v113
    %v232 = vunpack.c.h.b16 %v113
    %v233 = vunpack.c.l.b16 %v114
    %v234 = vunpack.c.h.b16 %v114
    %v235 = vpack.c.b16 %v165, %v163
    %v236 = vpack.c.b16 %v166, %v164
    %v237 = vpack.c.b16 %v169, %v167
    %v238 = vpack.c.b16 %v170, %v168
    %v239 = vpack.c.b16 %v173, %v171
    %v240 = vpack.c.b16 %v174, %v172
    %v241 = vpack.c.b16 %v177, %v175
    %v242 = vpack.c.b16 %v178, %v176
    %v243 = vpack.c.b16 %v181, %v179
    %v244 = vpack.c.b16 %v182, %v180
    %v245 = vpack.c.b16 %v185, %v183
    %v246 = vpack.c.b16 %v186, %v184
    %v247 = vpack.c.b16 %v189, %v187
    %v248 = vpack.c.b16 %v190, %v188
    %v249 = vpack.c.b16 %v193, %v191
    %v250 = vpack.c.b16 %v194, %v192
    %v251 = vpack.c.b16 %v197, %v195
    %v252 = vpack.c.b16 %v198, %v196
    %v253 = vpack.c.b16 %v201, %v199
    %v254 = vpack.c.b16 %v202, %v200
    %v255 = vpack.c.b16 %v205, %v203
    %v256 = vpack.c.b16 %v206, %v204
    %v257 = vpack.c.b16 %v209, %v207
    %v258 = vpack.c.b16 %v210, %v208
    %v259 = vpack.c.b16 %v213, %v211
    %v260 = vpack.c.b16 %v214, %v212
    %v261 = vpack.c.b16 %v217, %v215
    %v262 = vpack.c.b16 %v218, %v216
    %v263 = vpack.c.b16 %v221, %v219
    %v264 = vpack.c.b16 %v222, %v220
    %v265 = vpack.c.b16 %v225, %v223
    %v266 = vpack.c.b16 %v226, %v224
    %v267 = vpack.c.b16 %v229, %v227
    %v268 = vpack.c.b16 %v230, %v228
    %v269 = vpack.c.b16 %v233, %v231
    %v270 = vpack.c.b16 %v234, %v232
    %vm305 = vcmask 228352
    %v307 = vsel %vm305, %v78, 0
    %vm309 = vcmask 1045504
    %v311 = vsel %vm309, %v269, 0
    %v314 = vsel %vm309, %v270, 0
    %316 = vmatprep.subr.bf16.mxu0 %v250
    %317 = vmatpush1.bf16.msra.mxu0 %v249
    %318 = vmatprep.subr.bf16.mxu0 %v248
    %319 = vmatpush1.bf16.msra.mxu0 %v247
    %320 = vmatprep.subr.bf16.mxu0 %v246
    %321 = vmatpush1.bf16.msra.mxu0 %v245
    %322 = vmatprep.subr.bf16.mxu0 %v244
    %323 = vmatpush1.bf16.msra.mxu0 %v243
    %324 = vmatprep.subr.bf16.mxu0 %v242
    %325 = vmatpush1.bf16.msra.mxu0 %v241
    %326 = vmatprep.subr.bf16.mxu0 %v240
    %327 = vmatpush1.bf16.msra.mxu0 %v239
    %328 = vmatprep.subr.bf16.mxu0 %v238
    %329 = vmatpush1.bf16.msra.mxu0 %v237
    %330 = vmatprep.subr.bf16.mxu0 %v236
    %331 = vmatpush1.bf16.msra.mxu0 %v235
    %332 = vmatprep.subr.bf16.mxu0 %v266
    %333 = vmatpush2.bf16.msra.mxu0 %v265
    %334 = vmatprep.subr.bf16.mxu0 %v264
    %335 = vmatpush2.bf16.msra.mxu0 %v263
    %336 = vmatprep.subr.bf16.mxu0 %v262
    %337 = vmatpush2.bf16.msra.mxu0 %v261
    %338 = vmatprep.subr.bf16.mxu0 %v260
    %339 = vmatpush2.bf16.msra.mxu0 %v259
    %340 = vmatprep.subr.bf16.mxu0 %v258
    %341 = vmatpush2.bf16.msra.mxu0 %v257
    %342 = vmatprep.subr.bf16.mxu0 %v256
    %343 = vmatpush2.bf16.msra.mxu0 %v255
    %344 = vmatprep.subr.bf16.mxu0 %v254
    %345 = vmatpush2.bf16.msra.mxu0 %v253
    %346 = vmatprep.subr.bf16.mxu0 %v252
    %347 = vmatpush2.bf16.msra.mxu0 %v251
    %348 = vmatprep.mubr.bf16.mxu0 %v77
    %349 = vmatmul.mubr.bf16.gmra.mxu0 %v76
    %v350 = vpop.f32.mrf.mxu0
    %v351 = vadd.f32 %v120, %v350
    %v352 = vpop.f32.mrf.mxu0
    %v353 = vadd.f32 %v124, %v352
    %v354 = vpop.f32.mrf.mxu0
    %v355 = vpop.f32.mrf.mxu0
    %356 = vdwg.mxu0
    %357 = vmatprep.subr.bf16.mxu0 0
    %358 = vmatpush1.bf16.msra.mxu0 0
    %359 = vmatprep.subr.bf16.mxu0 0
    %360 = vmatpush1.bf16.msra.mxu0 0
    %361 = vmatprep.subr.bf16.mxu0 0
    %362 = vmatpush1.bf16.msra.mxu0 0
    %363 = vmatprep.subr.bf16.mxu0 0
    %364 = vmatpush1.bf16.msra.mxu0 0
    %365 = vmatprep.subr.bf16.mxu0 0
    %366 = vmatpush1.bf16.msra.mxu0 0
    %367 = vmatprep.subr.bf16.mxu0 0
    %368 = vmatpush1.bf16.msra.mxu0 0
    %369 = vmatprep.subr.bf16.mxu0 %v314
    %370 = vmatpush1.bf16.msra.mxu0 %v311
    %371 = vmatprep.subr.bf16.mxu0 %v268
    %372 = vmatpush1.bf16.msra.mxu0 %v267
    %373 = vmatprep.subr.bf16.mxu0 0
    %374 = vmatpush2.bf16.msra.mxu0 0
    %375 = vmatprep.subr.bf16.mxu0 0
    %376 = vmatpush2.bf16.msra.mxu0 0
    %377 = vmatprep.subr.bf16.mxu0 0
    %378 = vmatpush2.bf16.msra.mxu0 0
    %379 = vmatprep.subr.bf16.mxu0 0
    %380 = vmatpush2.bf16.msra.mxu0 0
    %381 = vmatprep.subr.bf16.mxu0 0
    %382 = vmatpush2.bf16.msra.mxu0 0
    %383 = vmatprep.subr.bf16.mxu0 0
    %384 = vmatpush2.bf16.msra.mxu0 0
    %385 = vmatprep.subr.bf16.mxu0 0
    %386 = vmatpush2.bf16.msra.mxu0 0
    %387 = vmatprep.subr.bf16.mxu0 0
    %388 = vmatpush2.bf16.msra.mxu0 0
    %389 = vmatprep.mubr.bf16.mxu0 0
    %390 = vmatmul.mubr.bf16.gmra.mxu0 %v307
    %v391 = vpop.f32.mrf.mxu0
    %v392 = vadd.f32 %v351, %v391
    %v393 = vpop.f32.mrf.mxu0
    %v394 = vadd.f32 %v353, %v393
    %v395 = vpop.f32.mrf.mxu0
    %v396 = vpop.f32.mrf.mxu0
    %397 = vdwg.mxu0
    %v398 = vmax.f32 %v392, 0.0
    %v399 = vmax.f32 %v394, 0.0
    %v400 = vpack.c.bf16 %v398, %v398
    %v401 = vpack.c.bf16 %v399, %v399
    %v402 = vld [vmem:[#allocation8] sm:$0xff]
    %v403 = vld [vmem:[#allocation8 + $0x8] sm:$0xff]
    %v404 = vld [vmem:[#allocation8 + $0x10] sm:$0xff]
    %v405 = vld [vmem:[#allocation8 + $0x18] sm:$0xff]
    %v406 = vld [vmem:[#allocation8 + $0x20] sm:$0xff]
    %v407 = vld [vmem:[#allocation8 + $0x28] sm:$0xff]
    %v408 = vld [vmem:[#allocation8 + $0x30] sm:$0xff]
    %v409 = vld [vmem:[#allocation8 + $0x38] sm:$0xff]
    %v410 = vld [vmem:[#allocation8 + $0x40] sm:$0xff]
    %v411 = vld [vmem:[#allocation8 + $0x48] sm:$0xff]
    %v412 = vld [vmem:[#allocation8 + $0x50] sm:$0xff]
    %v413 = vld [vmem:[#allocation8 + $0x58] sm:$0xff]
    %v414 = vld [vmem:[#allocation8 + $0x60] sm:$0xff]
    %v415 = vld [vmem:[#allocation8 + $0x68] sm:$0xff]
    %v416 = vld [vmem:[#allocation8 + $0x70] sm:$0xff]
    %v417 = vld [vmem:[#allocation8 + $0x78] sm:$0xff]
    %v418 = vld [vmem:[#allocation8 + $0x80] sm:$0xff]
    %v419 = vld [vmem:[#allocation8 + $0x88] sm:$0xff]
    %v420 = vld [vmem:[#allocation8 + $0x90] sm:$0xff]
    %v421 = vld [vmem:[#allocation8 + $0x98] sm:$0xff]
    %v422 = vld [vmem:[#allocation8 + $0xa0] sm:$0xff]
    %v423 = vld [vmem:[#allocation8 + $0xa8] sm:$0xff]
    %v424 = vld [vmem:[#allocation8 + $0xb0] sm:$0xff]
    %v425 = vld [vmem:[#allocation8 + $0xb8] sm:$0xff]
    %v426 = vld [vmem:[#allocation8 + $0xc0] sm:$0xff]
    %v427 = vld [vmem:[#allocation8 + $0xc8] sm:$0xff]
    %v428 = vld [vmem:[#allocation8 + $0xd0] sm:$0xff]
    %v429 = vld [vmem:[#allocation8 + $0xd8] sm:$0xff]
    %v430 = vld [vmem:[#allocation8 + $0xe0] sm:$0xff]
    %v431 = vld [vmem:[#allocation8 + $0xe8] sm:$0xff]
    %v432 = vld [vmem:[#allocation8 + $0xf0] sm:$0xff]
    %v433 = vld [vmem:[#allocation8 + $0xf8] sm:$0xff]
    %v434 = vld [vmem:[%s4] sm:$0x3]
    %v436 = vlaneseq
    %v437 = vshrl.u32 %v436, 7
    %v438 = vsub.s32 0, %v437
    %v439 = vrot.slane %v434, %v438
    %v440 = vlaneseq
    %v441 = vshrl.u32 %v440, 7
    %v442 = vsub.s32 1, %v441
    %v443 = vrot.slane %v434, %v442
    %v478 = vunpack.c.l.b16 %v402
    %v479 = vunpack.c.h.b16 %v402
    %v480 = vunpack.c.l.b16 %v403
    %v481 = vunpack.c.h.b16 %v403
    %v482 = vunpack.c.l.b16 %v404
    %v483 = vunpack.c.h.b16 %v404
    %v484 = vunpack.c.l.b16 %v405
    %v485 = vunpack.c.h.b16 %v405
    %v486 = vunpack.c.l.b16 %v406
    %v487 = vunpack.c.h.b16 %v406
    %v488 = vunpack.c.l.b16 %v407
    %v489 = vunpack.c.h.b16 %v407
    %v490 = vunpack.c.l.b16 %v408
    %v491 = vunpack.c.h.b16 %v408
    %v492 = vunpack.c.l.b16 %v409
    %v493 = vunpack.c.h.b16 %v409
    %v494 = vunpack.c.l.b16 %v410
    %v495 = vunpack.c.h.b16 %v410
    %v496 = vunpack.c.l.b16 %v411
    %v497 = vunpack.c.h.b16 %v411
    %v498 = vunpack.c.l.b16 %v412
    %v499 = vunpack.c.h.b16 %v412
    %v500 = vunpack.c.l.b16 %v413
    %v501 = vunpack.c.h.b16 %v413
    %v502 = vunpack.c.l.b16 %v414
    %v503 = vunpack.c.h.b16 %v414
    %v504 = vunpack.c.l.b16 %v415
    %v505 = vunpack.c.h.b16 %v415
    %v506 = vunpack.c.l.b16 %v416
    %v507 = vunpack.c.h.b16 %v416
    %v508 = vunpack.c.l.b16 %v417
    %v509 = vunpack.c.h.b16 %v417
    %v510 = vunpack.c.l.b16 %v418
    %v511 = vunpack.c.h.b16 %v418
    %v512 = vunpack.c.l.b16 %v419
    %v513 = vunpack.c.h.b16 %v419
    %v514 = vunpack.c.l.b16 %v420
    %v515 = vunpack.c.h.b16 %v420
    %v516 = vunpack.c.l.b16 %v421
    %v517 = vunpack.c.h.b16 %v421
    %v518 = vunpack.c.l.b16 %v422
    %v519 = vunpack.c.h.b16 %v422
    %v520 = vunpack.c.l.b16 %v423
    %v521 = vunpack.c.h.b16 %v423
    %v522 = vunpack.c.l.b16 %v424
    %v523 = vunpack.c.h.b16 %v424
    %v524 = vunpack.c.l.b16 %v425
    %v525 = vunpack.c.h.b16 %v425
    %v526 = vunpack.c.l.b16 %v426
    %v527 = vunpack.c.h.b16 %v426
    %v528 = vunpack.c.l.b16 %v427
    %v529 = vunpack.c.h.b16 %v427
    %v530 = vunpack.c.l.b16 %v428
    %v531 = vunpack.c.h.b16 %v428
    %v532 = vunpack.c.l.b16 %v429
    %v533 = vunpack.c.h.b16 %v429
    %v534 = vunpack.c.l.b16 %v430
    %v535 = vunpack.c.h.b16 %v430
    %v536 = vunpack.c.l.b16 %v431
    %v537 = vunpack.c.h.b16 %v431
    %v538 = vunpack.c.l.b16 %v432
    %v539 = vunpack.c.h.b16 %v432
    %v540 = vunpack.c.l.b16 %v433
    %v541 = vunpack.c.h.b16 %v433
    %v542 = vpack.c.b16 %v480, %v478
    %v543 = vpack.c.b16 %v481, %v479
    %v544 = vpack.c.b16 %v484, %v482
    %v545 = vpack.c.b16 %v485, %v483
    %v546 = vpack.c.b16 %v488, %v486
    %v547 = vpack.c.b16 %v489, %v487
    %v548 = vpack.c.b16 %v492, %v490
    %v549 = vpack.c.b16 %v493, %v491
    %v550 = vpack.c.b16 %v496, %v494
    %v551 = vpack.c.b16 %v497, %v495
    %v552 = vpack.c.b16 %v500, %v498
    %v553 = vpack.c.b16 %v501, %v499
    %v554 = vpack.c.b16 %v504, %v502
    %v555 = vpack.c.b16 %v505, %v503
    %v556 = vpack.c.b16 %v508, %v506
    %v557 = vpack.c.b16 %v509, %v507
    %v558 = vpack.c.b16 %v512, %v510
    %v559 = vpack.c.b16 %v513, %v511
    %v560 = vpack.c.b16 %v516, %v514
    %v561 = vpack.c.b16 %v517, %v515
    %v562 = vpack.c.b16 %v520, %v518
    %v563 = vpack.c.b16 %v521, %v519
    %v564 = vpack.c.b16 %v524, %v522
    %v565 = vpack.c.b16 %v525, %v523
    %v566 = vpack.c.b16 %v528, %v526
    %v567 = vpack.c.b16 %v529, %v527
    %v568 = vpack.c.b16 %v532, %v530
    %v569 = vpack.c.b16 %v533, %v531
    %v570 = vpack.c.b16 %v536, %v534
    %v571 = vpack.c.b16 %v537, %v535
    %v572 = vpack.c.b16 %v540, %v538
    %v573 = vpack.c.b16 %v541, %v539
    %606 = vmatprep.subr.bf16.mxu0 %v557
    %607 = vmatpush1.bf16.msra.mxu0 %v556
    %608 = vmatprep.subr.bf16.mxu0 %v555
    %609 = vmatpush1.bf16.msra.mxu0 %v554
    %610 = vmatprep.subr.bf16.mxu0 %v553
    %611 = vmatpush1.bf16.msra.mxu0 %v552
    %612 = vmatprep.subr.bf16.mxu0 %v551
    %613 = vmatpush1.bf16.msra.mxu0 %v550
    %614 = vmatprep.subr.bf16.mxu0 %v549
    %615 = vmatpush1.bf16.msra.mxu0 %v548
    %616 = vmatprep.subr.bf16.mxu0 %v547
    %617 = vmatpush1.bf16.msra.mxu0 %v546
    %618 = vmatprep.subr.bf16.mxu0 %v545
    %619 = vmatpush1.bf16.msra.mxu0 %v544
    %620 = vmatprep.subr.bf16.mxu0 %v543
    %621 = vmatpush1.bf16.msra.mxu0 %v542
    %622 = vmatprep.subr.bf16.mxu0 %v573
    %623 = vmatpush2.bf16.msra.mxu0 %v572
    %624 = vmatprep.subr.bf16.mxu0 %v571
    %625 = vmatpush2.bf16.msra.mxu0 %v570
    %626 = vmatprep.subr.bf16.mxu0 %v569
    %627 = vmatpush2.bf16.msra.mxu0 %v568
    %628 = vmatprep.subr.bf16.mxu0 %v567
    %629 = vmatpush2.bf16.msra.mxu0 %v566
    %630 = vmatprep.subr.bf16.mxu0 %v565
    %631 = vmatpush2.bf16.msra.mxu0 %v564
    %632 = vmatprep.subr.bf16.mxu0 %v563
    %633 = vmatpush2.bf16.msra.mxu0 %v562
    %634 = vmatprep.subr.bf16.mxu0 %v561
    %635 = vmatpush2.bf16.msra.mxu0 %v560
    %636 = vmatprep.subr.bf16.mxu0 %v559
    %637 = vmatpush2.bf16.msra.mxu0 %v558
    %638 = vmatprep.mubr.bf16.mxu0 %v401
    %639 = vmatmul.mubr.bf16.gmra.mxu0 %v400
    %v640 = vpop.f32.mrf.mxu0
    %v641 = vadd.f32 %v439, %v640
    %v642 = vpop.f32.mrf.mxu0
    %v643 = vadd.f32 %v443, %v642
    %v644 = vpop.f32.mrf.mxu0
    %v645 = vpop.f32.mrf.mxu0
    %646 = vdwg.mxu0
    %647 = vst [vmem:[#allocation10] sm:$0xff] %v641
    %vm648 = vcmask 1031168
    %649 = vst.msk [vmem:[#allocation10 + $0x8] sm:$0xff] %vm648, %v643
    // Predicated region
    $region38: #{post_embedding_processor.1} parent=1 // pred_check
      _
    $region39: #{post_embedding_processor.1} parent=1 // pred_check_branch
      %651 = sbr.rel (0) target = $region41
    $region40: #{post_embedding_processor.1} parent=1 // pred_region
      %s653 = ssub.s32 256, 256
      %654 = vsyncadd [#allocation4], %s653
      %s656 = sshll.u32 [#allocation10], 4
      %s657 = int_to_ptr.vmem [resolvable:$true] %s656
      %659 = dma.vmem_to_hbm [thread:$0]  %s657, 256, %s5, [#allocation4]
    $region41: #{post_embedding_processor.1} parent=1 // pred_fallthru
      _
    // Predicated region
    $region42: #{post_embedding_processor.1} parent=1 // pred_check
      _
    $region43: #{post_embedding_processor.1} parent=1 // pred_check_branch
      %661 = sbr.rel (0) target = $region45
    $region44: #{post_embedding_processor.1} parent=1 // pred_region
      %662 = dma.done [#allocation4], 256
    $region45: #{post_embedding_processor.1} parent=1 // pred_fallthru
      _
    %663 = vsyncpa [#allocation3], 1
    %664 = vsyncpa [#allocation6], 1
    %665 = vsyncpa [#allocation9], 1
    %666 = vsyncpa [#allocation4], 1

</llo_original>
